<compile_context>
chip_gen: v5e
topology: v5e:2x2
jax: 0.10.0
libtpu: 0.0.40
codegen_flags: <defaults>
</compile_context>

<pallas_src>
import math
import functools

import jax
import jax.numpy as jnp
from jax.experimental import pallas as pl
from jax.experimental.pallas import tpu as pltpu


_TARGET_TILE_BYTES = 2 * 1024 * 1024  # ~2 MiB per output tile (plus ~1.5x temporaries)


# ---------------------------------------------------------------------------
# Kernels
# ---------------------------------------------------------------------------

def _pos_emb_rowmajor_kernel(x_ref, freq_ref, out_ref, *, half_dim, scale):
    # Layout A (dim >= 128): timesteps on sublanes, frequencies on lanes.
    #   x_ref:    (TILE_N, 1)            f32
    #   freq_ref: (1, half_dim)          f32, resident across the grid
    #   out_ref:  (TILE_N, 2*half_dim)
    xs = x_ref[...] * scale                       # (TILE_N, 1)   -- matches (x*scale)
    arg = xs * freq_ref[...]                      # outer product -> (TILE_N, H)
    # Two aligned slice stores; fully lane-dense (unmasked vst) when
    # half_dim % 128 == 0 (i.e. dim a multiple of 256).
    out_ref[:, :half_dim] = jnp.sin(arg).astype(out_ref.dtype)
    out_ref[:, half_dim:] = jnp.cos(arg).astype(out_ref.dtype)


def _pos_emb_transposed_kernel(freq_ref, x_ref, out_ref, *, half_dim, scale):
    # Layout B (dim < 128): timesteps on LANES so every vreg / store is dense.
    #   freq_ref: (half_dim, 1)          f32, resident
    #   x_ref:    (1, TILE_N)            f32
    #   out_ref:  (2*half_dim, TILE_N)   transposed; wrapper transposes back
    xs = x_ref[...] * scale                       # (1, TILE_N)
    arg = freq_ref[...] * xs                      # (H, TILE_N)  same bits as (x*scale)*f
    out_ref[:half_dim, :] = jnp.sin(arg).astype(out_ref.dtype)
    out_ref[half_dim:, :] = jnp.cos(arg).astype(out_ref.dtype)


# ---------------------------------------------------------------------------
# Host-side helpers
# ---------------------------------------------------------------------------

@functools.lru_cache(maxsize=None)
def _freq_table(half_dim):
    # Parameter-free constant; cached per half_dim so repeated calls don't
    # re-emit the tiny exp/arange ops.
    emb = math.log(10000.0) / half_dim
    return jnp.exp(jnp.arange(half_dim, dtype=jnp.float32) * -emb)


def _pick_tile(n, row_bytes, align):
    """Rows per tile: byte-budgeted, `align`-aligned, never exceeding n."""
    t = max(align, (_TARGET_TILE_BYTES // row_bytes) // align * align)
    return n if t >= n else t                     # == n uses the "equal full dim" rule


def positional_embedding(x, dim, scale=1.0, *, out_dtype=jnp.float32):
    """Pallas equivalent of PositionalEmbedding.forward.

    x: (N,) timesteps (any float/int dtype). Returns (N, dim) in `out_dtype`.
    """
    assert dim % 2 == 0
    half_dim = dim // 2
    N = x.shape[0]
    scale = float(scale)
    x = x.astype(jnp.float32)
    freqs = _freq_table(half_dim)
    out_bytes = N * dim * jnp.dtype(out_dtype).itemsize
    cost = pl.CostEstimate(
        flops=2 * N * half_dim,
        transcendentals=N * dim,
        bytes_accessed=out_bytes + (N + half_dim) * 4,
    )

    if dim >= 128:
        # ----- Layout A: row-major (N, dim) output -----
        tile_n = _pick_tile(N, 4 * dim, 8)
        grid = (pl.cdiv(N, tile_n),)   # ragged trailing block handled by Pallas
        kernel = functools.partial(
            _pos_emb_rowmajor_kernel, half_dim=half_dim, scale=scale)
        return pl.pallas_call(
            kernel,
            out_shape=jax.ShapeDtypeStruct((N, dim), out_dtype),
            grid=grid,
            in_specs=[
                pl.BlockSpec((tile_n, 1), lambda i: (i, 0)),       # tiled timesteps
                pl.BlockSpec((1, half_dim), lambda i: (0, 0)),     # resident freq row
            ],
            out_specs=pl.BlockSpec((tile_n, dim), lambda i: (i, 0)),
            compiler_params=pltpu.CompilerParams(
                dimension_semantics=("parallel",),
            ),
            cost_estimate=cost,
        )(x.reshape(N, 1), freqs.reshape(1, half_dim))

    # ----- Layout B: small dim -> transposed (dim, N) output, N on lanes -----
    tile_n = _pick_tile(N, 4 * dim, 128)
    grid = (pl.cdiv(N, tile_n),)
    kernel = functools.partial(
        _pos_emb_transposed_kernel, half_dim=half_dim, scale=scale)
    out_t = pl.pallas_call(
        kernel,
        out_shape=jax.ShapeDtypeStruct((dim, N), out_dtype),
        grid=grid,
        in_specs=[
            pl.BlockSpec((half_dim, 1), lambda i: (0, 0)),         # resident freq col
            pl.BlockSpec((1, tile_n), lambda i: (0, i)),           # tiled timesteps
        ],
        out_specs=pl.BlockSpec((dim, tile_n), lambda i: (0, i)),
        compiler_params=pltpu.CompilerParams(
            dimension_semantics=("parallel",),
        ),
        cost_estimate=cost,
    )(freqs.reshape(half_dim, 1), x.reshape(1, N))
    # Layout plumbing back to (N, dim); cheaper than 16-of-128-lane masked stores.
    return out_t.T


# ---------------------------------------------------------------------------
# Demo / correctness check
# ---------------------------------------------------------------------------

if __name__ == "__main__":
    key = jax.random.PRNGKey(0)
    k1, k2 = jax.random.split(key)

    def reference(x, dim, scale):
        half = dim // 2
        emb = math.log(10000.0) / half
        f = jnp.exp(jnp.arange(half, dtype=jnp.float32) * -emb)
        arg = jnp.outer(x * scale, f)
        return jnp.concatenate((jnp.sin(arg), jnp.cos(arg)), axis=-1)

    # Small-dim path (transposed, lane-dense layout): N=8, dim=32.
    N1, dim1, scale1 = 8, 32, 50.0
    x1 = jax.random.uniform(k1, (N1,), dtype=jnp.float32)
    out1 = jax.block_until_ready(positional_embedding(x1, dim1, scale1))
    assert out1.shape == (N1, dim1)
    assert jnp.allclose(out1, reference(x1, dim1, scale1), atol=1e-4, rtol=1e-4)

    # Wide-dim path (row-major halves, ragged row tile): N=10, dim=256.
    N2, dim2, scale2 = 10, 256, 1.0
    x2 = jax.random.uniform(k2, (N2,), dtype=jnp.float32) * 50.0
    out2 = jax.block_until_ready(positional_embedding(x2, dim2, scale2))
    assert out2.shape == (N2, dim2)
    assert jnp.allclose(out2, reference(x2, dim2, scale2), atol=1e-4, rtol=1e-4)

    print("KERNEL_OK")
</pallas_src>

<mosaic_0001>
module attributes {stable_mosaic.version = 11 : i64} {
  func.func @_pos_emb_transposed_kernel(%arg0: i32, %arg1: memref<16x1xf32, #tpu.memory_space<vmem>>, %arg2: memref<1x8xf32, #tpu.memory_space<vmem>>, %arg3: memref<32x8xf32, #tpu.memory_space<vmem>>) attributes {dimension_semantics = [#tpu.dimension_semantics<parallel>], iteration_bounds = array<i64: 1>, scalar_prefetch = 0 : i64, scratch_operands = 0 : i64, tpu.core_type = #tpu.core_type<tc>, window_params = [{pipeline_mode = #tpu.pipeline_mode<synchronous>, transform_indices = @transform_0, window_bounds = array<i64: 16, 1>}, {transform_indices = @transform_1, window_bounds = array<i64: 1, 8>}, {transform_indices = @transform_2, window_bounds = array<i64: 32, 8>}]} {
    %c0 = arith.constant 0 : index
    %c0_0 = arith.constant 0 : index
    %0 = vector.load %arg2[%c0, %c0_0] : memref<1x8xf32, #tpu.memory_space<vmem>>, vector<1x8xf32>
    %cst = arith.constant 5.000000e+01 : f32
    %1 = vector.broadcast %cst : f32 to vector<1x8xf32>
    %2 = arith.mulf %0, %1 : vector<1x8xf32>
    %c0_1 = arith.constant 0 : index
    %c0_2 = arith.constant 0 : index
    %3 = vector.load %arg1[%c0_1, %c0_2] : memref<16x1xf32, #tpu.memory_space<vmem>>, vector<16x1xf32>
    %4 = vector.broadcast %3 : vector<16x1xf32> to vector<16x8xf32>
    %5 = vector.broadcast %2 : vector<1x8xf32> to vector<16x8xf32>
    %6 = arith.mulf %4, %5 : vector<16x8xf32>
    %7 = math.sin %6 : vector<16x8xf32>
    %c0_3 = arith.constant 0 : index
    %c0_4 = arith.constant 0 : index
    %8 = vector.load %arg3[%c0_3, %c0_4] : memref<32x8xf32, #tpu.memory_space<vmem>>, vector<16x8xf32>
    tpu.vector_store %arg3[%c0_3, %c0_4], %7 {strides = array<i32>} : memref<32x8xf32, #tpu.memory_space<vmem>>, vector<16x8xf32>,
    %9 = math.cos %6 : vector<16x8xf32>
    %c16 = arith.constant 16 : index
    %c0_5 = arith.constant 0 : index
    %10 = vector.load %arg3[%c16, %c0_5] : memref<32x8xf32, #tpu.memory_space<vmem>>, vector<16x8xf32>
    tpu.vector_store %arg3[%c16, %c0_5], %9 {strides = array<i32>} : memref<32x8xf32, #tpu.memory_space<vmem>>, vector<16x8xf32>,
    return
  }
  func.func @transform_0(%arg0: i32) -> (i32, i32) {
    %c0_i32 = arith.constant 0 : i32
    %c0_i32_0 = arith.constant 0 : i32
    %c0_i32_1 = arith.constant 0 : i32
    return %c0_i32, %c0_i32_0 : i32, i32
  }
  func.func @transform_1(%arg0: i32) -> (i32, i32) {
    %c0_i32 = arith.constant 0 : i32
    %c0_i32_0 = arith.constant 0 : i32
    return %c0_i32, %arg0 : i32, i32
  }
  func.func @transform_2(%arg0: i32) -> (i32, i32) {
    %c0_i32 = arith.constant 0 : i32
    %c0_i32_0 = arith.constant 0 : i32
    return %c0_i32, %arg0 : i32, i32
  }
}

</mosaic_0001>

<llo_original>
// kernel: tpu_custom_call.1
$region0: #{tpu_custom_call.1}
  #allocation0 [shape = 'u32[]', space=smem, size = 0x4, offset = 0x4, fixed_abs, tag = 'smem constant byte address 0x4 - core index']
  #allocation1 [shape = 'u32[72,128]{1,0:T(1,128)}', space=vmem, size = 0x9000, scoped, tag = 'internal scratch']
  %s0 = inlined_call_operand.vmem [shape: f32[16,1], index: 0, kind: input, shape index: {}]
  %s1 = inlined_call_operand.vmem [shape: f32[1,8], index: 1, kind: input, shape index: {}]
  %s2 = inlined_call_operand.vmem [shape: f32[32,8], index: 2, kind: output, shape index: {}]
  %s3 = sld [smem:[#allocation0]]
  $region18: #{tpu_custom_call.1} parent=0
    _
  %s5 = ssub.s32 1, %s3
  %s6 = scalar_select 0, %s5, %s3
  // Predicated region
  $region2: #{tpu_custom_call.1} parent=0 // pred_check
    _
  $region3: #{tpu_custom_call.1} parent=0 // pred_check_branch
    %8 = sbr.rel (0) target = $region5
  $region4: #{tpu_custom_call.1} parent=0 // pred_region
    _
  $region5: #{tpu_custom_call.1} parent=0 // pred_fallthru
    _
  // Predicated region
  $region6: #{tpu_custom_call.1} parent=0 // pred_check
    _
  $region7: #{tpu_custom_call.1} parent=0 // pred_check_branch
    %10 = sbr.rel (0) target = $region9
  $region8: #{tpu_custom_call.1} parent=0 // pred_region
    _
  $region9: #{tpu_custom_call.1} parent=0 // pred_fallthru
    _
  %v11 = vld [vmem:[%s1] sm:$0x1]
  %v12 = vmul.f32 %v11, 50.0
  %v13 = vld [vmem:[%s0] sm:$0xff]
  %v14 = vld [vmem:[%s0 + $0x8] sm:$0xff]
  %16 = vset.pattern.permute.xlu0 0
  %17 = vperm.xlu0 %16, %v13
  %v18 = vpop.permute.xlu0 %17
  %21 = vset.pattern.permute.xlu0 0
  %22 = vperm.xlu0 %21, %v14
  %v23 = vpop.permute.xlu0 %22
  %v26 = vperm.slane %v12, 0
  %v28 = vmul.f32 %v18, %v26
  %v29 = vmul.f32 %v23, %v26
  %v30 = vand.u32 2147483647, %v28
  %vm31 = vcmp.le.f32.partialorder %v30, 0.7853982
  %vm32 = vcmp.lt.s32.totalorder %v28, 0
  %v33 = vand.u32 %v28, 2139095040
  %v34 = vshrl.u32 %v33, 23
  %v35 = vsub.s32 %v34, 127
  %v36 = vand.u32 2147483647, %v28
  %v37 = vand.u32 %v36, 8388607
  %v38 = vor.u32 %v37, 8388608
  %v39 = vsub.s32 0, %v38
  %v40 = vadd.s32 %v35, 1
  %vm41 = vcmp.gt.s32.totalorder %v40, 0
  %v42 = vsel %vm41, %v40, 0
  %v43 = vshrl.u32 %v42, 5
  %v44 = vand.u32 %v42, 31
  %v45 = vsub.s32 32, %v44
  %v46 = vshrl.u32 683565275, %v45
  %v47 = vshll.u32 683565275, %v44
  %v48 = vshrl.u32 2475754826, %v45
  %v49 = vor.u32 %v47, %v48
  %v50 = vshll.u32 2475754826, %v44
  %v51 = vshrl.u32 2131351028, %v45
  %v52 = vor.u32 %v50, %v51
  %v53 = vshll.u32 2131351028, %v44
  %v54 = vshrl.u32 2102212464, %v45
  %v55 = vor.u32 %v53, %v54
  %v56 = vshll.u32 2102212464, %v44
  %v57 = vshrl.u32 920167782, %v45
  %v58 = vor.u32 %v56, %v57
  %v59 = vshll.u32 920167782, %v44
  %v60 = vshrl.u32 1326507024, %v45
  %v61 = vor.u32 %v59, %v60
  %vm62 = vcmp.lt.s32.totalorder %v43, 1
  %vm63 = vcmp.lt.s32.totalorder %v43, 2
  %vm64 = vcmp.lt.s32.totalorder %v43, 3
  %vm65 = vcmp.lt.s32.totalorder %v43, 4
  %v66 = vsel %vm62, %v46, %v49
  %v67 = vsel %vm65, %v55, 2102212464
  %v68 = vsel %vm64, %v52, %v67
  %v69 = vsel %vm63, %v66, %v68
  %v70 = vsel %vm62, %v49, %v52
  %v71 = vsel %vm65, %v58, 920167782
  %v72 = vsel %vm64, %v55, %v71
  %v73 = vsel %vm63, %v70, %v72
  %v74 = vsel %vm62, %v52, %v55
  %v75 = vsel %vm65, %v61, 1326507024
  %v76 = vsel %vm64, %v58, %v75
  %v77 = vsel %vm63, %v74, %v76
  %v78 = vshll.u32 %v38, 8
  %v79 = vand.u32 %v78, 65535
  %v80 = vshrl.u32 %v78, 16
  %v81 = vand.u32 %v77, 65535
  %v82 = vshrl.u32 %v77, 16
  %v83 = vmul.u32 %v79, %v81
  %v84 = vmul.u32 %v79, %v82
  %v85 = vmul.u32 %v80, %v81
  %v86 = vmul.u32 %v80, %v82
  %v87 = vshll.u32 %v84, 16
  %v88 = vshrl.u32 %v84, 16
  %v89 = vshll.u32 %v85, 16
  %v90 = vshrl.u32 %v85, 16
  %vm91 = vc.u32 %v83, %v87
  %v92 = vsel %vm91, 1, 0
  %v93 = vadd.s32 %v83, %v87
  %v94 = vadd.s32 %v86, %v92
  %vm95 = vc.u32 %v93, %v89
  %v96 = vsel %vm95, 1, 0
  %v97 = vadd.s32 %v93, %v89
  %v98 = vadd.s32 %v94, %v96
  %v99 = vadd.s32 %v98, %v88
  %v100 = vadd.s32 %v99, %v90
  %v101 = vand.u32 %v78, 65535
  %v102 = vshrl.u32 %v78, 16
  %v103 = vand.u32 %v73, 65535
  %v104 = vshrl.u32 %v73, 16
  %v105 = vmul.u32 %v101, %v103
  %v106 = vmul.u32 %v101, %v104
  %v107 = vmul.u32 %v102, %v103
  %v108 = vmul.u32 %v102, %v104
  %v109 = vshll.u32 %v106, 16
  %v110 = vshrl.u32 %v106, 16
  %v111 = vshll.u32 %v107, 16
  %v112 = vshrl.u32 %v107, 16
  %vm113 = vc.u32 %v105, %v109
  %v114 = vsel %vm113, 1, 0
  %v115 = vadd.s32 %v105, %v109
  %v116 = vadd.s32 %v108, %v114
  %vm117 = vc.u32 %v115, %v111
  %v118 = vsel %vm117, 1, 0
  %v119 = vadd.s32 %v115, %v111
  %v120 = vadd.s32 %v116, %v118
  %v121 = vadd.s32 %v120, %v110
  %v122 = vadd.s32 %v121, %v112
  %v123 = vmul.u32 %v78, %v69
  %v124 = vadd.s32 %v100, %v119
  %vm125 = vc.u32 %v100, %v119
  %v126 = vadd.s32 %v122, 1
  %v127 = vsel %vm125, %v126, %v122
  %v128 = vadd.s32 %v123, %v127
  %v129 = vadd.s32 %v128, 536870912
  %v130 = vshrl.u32 %v129, 30
  %v131 = vshll.u32 %v130, 30
  %v132 = vsub.s32 %v128, %v131
  %vm133 = vcmp.lt.s32.totalorder %v132, 0
  %v134 = vsub.s32 0, %v132
  %v135 = vsel %vm133, %v134, %v132
  %v136 = vclz %v135
  %v137 = vsub.s32 %v136, 2
  %vm138 = vcmp.gt.s32.totalorder 0, %v137
  %v139 = vsel %vm138, 0, %v137
  %v140 = vsub.s32 32, %v139
  %v141 = vshll.u32 %v132, %v139
  %v142 = vshrl.u32 %v124, %v140
  %v143 = vor.u32 %v141, %v142
  %v144 = vsub.s32 4294967266, %v139
  %v145 = vadd.s32 %v144, 127
  %v146 = vshll.u32 %v145, 23
  %v147 = vor.u32 4788187, %v146
  %v148 = vand.u32 2147483647, %v147
  %v150 = vcvt.s32.f32 %v143
  %v151 = vmul.f32 %v150, %v148
  %v152 = vxor.u32 %v151, 2147483648
  %v153 = vsel %vm32, %v152, %v151
  %v154 = vsub.s32 4, %v130
  %v155 = vsel %vm32, %v154, %v130
  %v156 = vsel %vm31, %v28, %v153
  %v157 = vsel %vm31, 0, %v155
  %v158 = vmul.f32 %v156, %v156
  %v159 = vmul.f32 %v158, -0.001358992
  %v160 = vadd.f32 %v159, 0.041655596
  %v161 = vmul.f32 %v158, %v160
  %v162 = vadd.f32 %v161, -0.4999988
  %v163 = vmul.f32 %v158, %v162
  %v164 = vadd.f32 1.0, %v163
  %v165 = vmul.f32 %v156, %v156
  %v166 = vmul.f32 %v165, -0.00019511016
  %v167 = vadd.f32 %v166, 0.008332121
  %v168 = vmul.f32 %v165, %v167
  %v169 = vadd.f32 %v168, -0.16666654
  %v170 = vmul.f32 %v165, %v169
  %v171 = vadd.f32 %v170, 1.0
  %v172 = vmul.f32 %v171, %v156
  %vm173 = vweird.f32 %v28
  %v174 = vadd.s32 %v157, 3
  %v175 = vand.u32 %v174, 3
  %vm176 = vcmp.lt.s32.totalorder %v175, 2
  %vm177 = vcmp.eq.s32.totalorder %v175, 0
  %v178 = vxor.u32 %v172, 2147483648
  %v179 = vsel %vm177, %v164, %v178
  %vm180 = vcmp.eq.s32.totalorder %v175, 2
  %v181 = vxor.u32 %v164, 2147483648
  %v182 = vsel %vm180, %v181, %v172
  %v183 = vsel %vm176, %v179, %v182
  %v184 = vsel %vm173, nan, %v183
  %v185 = vand.u32 2147483647, %v29
  %vm186 = vcmp.le.f32.partialorder %v185, 0.7853982
  %vm187 = vcmp.lt.s32.totalorder %v29, 0
  %v188 = vand.u32 %v29, 2139095040
  %v189 = vshrl.u32 %v188, 23
  %v190 = vsub.s32 %v189, 127
  %v191 = vand.u32 2147483647, %v29
  %v192 = vand.u32 %v191, 8388607
  %v193 = vor.u32 %v192, 8388608
  %v194 = vsub.s32 0, %v193
  %v195 = vadd.s32 %v190, 1
  %vm196 = vcmp.gt.s32.totalorder %v195, 0
  %v197 = vsel %vm196, %v195, 0
  %v198 = vshrl.u32 %v197, 5
  %v199 = vand.u32 %v197, 31
  %v200 = vsub.s32 32, %v199
  %v201 = vshrl.u32 683565275, %v200
  %v202 = vshll.u32 683565275, %v199
  %v203 = vshrl.u32 2475754826, %v200
  %v204 = vor.u32 %v202, %v203
  %v205 = vshll.u32 2475754826, %v199
  %v206 = vshrl.u32 2131351028, %v200
  %v207 = vor.u32 %v205, %v206
  %v208 = vshll.u32 2131351028, %v199
  %v209 = vshrl.u32 2102212464, %v200
  %v210 = vor.u32 %v208, %v209
  %v211 = vshll.u32 2102212464, %v199
  %v212 = vshrl.u32 920167782, %v200
  %v213 = vor.u32 %v211, %v212
  %v214 = vshll.u32 920167782, %v199
  %v215 = vshrl.u32 1326507024, %v200
  %v216 = vor.u32 %v214, %v215
  %vm217 = vcmp.lt.s32.totalorder %v198, 1
  %vm218 = vcmp.lt.s32.totalorder %v198, 2
  %vm219 = vcmp.lt.s32.totalorder %v198, 3
  %vm220 = vcmp.lt.s32.totalorder %v198, 4
  %v221 = vsel %vm217, %v201, %v204
  %v222 = vsel %vm220, %v210, 2102212464
  %v223 = vsel %vm219, %v207, %v222
  %v224 = vsel %vm218, %v221, %v223
  %v225 = vsel %vm217, %v204, %v207
  %v226 = vsel %vm220, %v213, 920167782
  %v227 = vsel %vm219, %v210, %v226
  %v228 = vsel %vm218, %v225, %v227
  %v229 = vsel %vm217, %v207, %v210
  %v230 = vsel %vm220, %v216, 1326507024
  %v231 = vsel %vm219, %v213, %v230
  %v232 = vsel %vm218, %v229, %v231
  %v233 = vshll.u32 %v193, 8
  %v234 = vand.u32 %v233, 65535
  %v235 = vshrl.u32 %v233, 16
  %v236 = vand.u32 %v232, 65535
  %v237 = vshrl.u32 %v232, 16
  %v238 = vmul.u32 %v234, %v236
  %v239 = vmul.u32 %v234, %v237
  %v240 = vmul.u32 %v235, %v236
  %v241 = vmul.u32 %v235, %v237
  %v242 = vshll.u32 %v239, 16
  %v243 = vshrl.u32 %v239, 16
  %v244 = vshll.u32 %v240, 16
  %v245 = vshrl.u32 %v240, 16
  %vm246 = vc.u32 %v238, %v242
  %v247 = vsel %vm246, 1, 0
  %v248 = vadd.s32 %v238, %v242
  %v249 = vadd.s32 %v241, %v247
  %vm250 = vc.u32 %v248, %v244
  %v251 = vsel %vm250, 1, 0
  %v252 = vadd.s32 %v248, %v244
  %v253 = vadd.s32 %v249, %v251
  %v254 = vadd.s32 %v253, %v243
  %v255 = vadd.s32 %v254, %v245
  %v256 = vand.u32 %v233, 65535
  %v257 = vshrl.u32 %v233, 16
  %v258 = vand.u32 %v228, 65535
  %v259 = vshrl.u32 %v228, 16
  %v260 = vmul.u32 %v256, %v258
  %v261 = vmul.u32 %v256, %v259
  %v262 = vmul.u32 %v257, %v258
  %v263 = vmul.u32 %v257, %v259
  %v264 = vshll.u32 %v261, 16
  %v265 = vshrl.u32 %v261, 16
  %v266 = vshll.u32 %v262, 16
  %v267 = vshrl.u32 %v262, 16
  %vm268 = vc.u32 %v260, %v264
  %v269 = vsel %vm268, 1, 0
  %v270 = vadd.s32 %v260, %v264
  %v271 = vadd.s32 %v263, %v269
  %vm272 = vc.u32 %v270, %v266
  %v273 = vsel %vm272, 1, 0
  %v274 = vadd.s32 %v270, %v266
  %v275 = vadd.s32 %v271, %v273
  %v276 = vadd.s32 %v275, %v265
  %v277 = vadd.s32 %v276, %v267
  %v278 = vmul.u32 %v233, %v224
  %v279 = vadd.s32 %v255, %v274
  %vm280 = vc.u32 %v255, %v274
  %v281 = vadd.s32 %v277, 1
  %v282 = vsel %vm280, %v281, %v277
  %v283 = vadd.s32 %v278, %v282
  %v284 = vadd.s32 %v283, 536870912
  %v285 = vshrl.u32 %v284, 30
  %v286 = vshll.u32 %v285, 30
  %v287 = vsub.s32 %v283, %v286
  %vm288 = vcmp.lt.s32.totalorder %v287, 0
  %v289 = vsub.s32 0, %v287
  %v290 = vsel %vm288, %v289, %v287
  %v291 = vclz %v290
  %v292 = vsub.s32 %v291, 2
  %vm293 = vcmp.gt.s32.totalorder 0, %v292
  %v294 = vsel %vm293, 0, %v292
  %v295 = vsub.s32 32, %v294
  %v296 = vshll.u32 %v287, %v294
  %v297 = vshrl.u32 %v279, %v295
  %v298 = vor.u32 %v296, %v297
  %v299 = vsub.s32 4294967266, %v294
  %v300 = vadd.s32 %v299, 127
  %v301 = vshll.u32 %v300, 23
  %v302 = vor.u32 4788187, %v301
  %v303 = vand.u32 2147483647, %v302
  %v305 = vcvt.s32.f32 %v298
  %v306 = vmul.f32 %v305, %v303
  %v307 = vxor.u32 %v306, 2147483648
  %v308 = vsel %vm187, %v307, %v306
  %v309 = vsub.s32 4, %v285
  %v310 = vsel %vm187, %v309, %v285
  %v311 = vsel %vm186, %v29, %v308
  %v312 = vsel %vm186, 0, %v310
  %v313 = vmul.f32 %v311, %v311
  %v314 = vmul.f32 %v313, -0.001358992
  %v315 = vadd.f32 %v314, 0.041655596
  %v316 = vmul.f32 %v313, %v315
  %v317 = vadd.f32 %v316, -0.4999988
  %v318 = vmul.f32 %v313, %v317
  %v319 = vadd.f32 1.0, %v318
  %v320 = vmul.f32 %v311, %v311
  %v321 = vmul.f32 %v320, -0.00019511016
  %v322 = vadd.f32 %v321, 0.008332121
  %v323 = vmul.f32 %v320, %v322
  %v324 = vadd.f32 %v323, -0.16666654
  %v325 = vmul.f32 %v320, %v324
  %v326 = vadd.f32 %v325, 1.0
  %v327 = vmul.f32 %v326, %v311
  %vm328 = vweird.f32 %v29
  %v329 = vadd.s32 %v312, 3
  %v330 = vand.u32 %v329, 3
  %vm331 = vcmp.lt.s32.totalorder %v330, 2
  %vm332 = vcmp.eq.s32.totalorder %v330, 0
  %v333 = vxor.u32 %v327, 2147483648
  %v334 = vsel %vm332, %v319, %v333
  %vm335 = vcmp.eq.s32.totalorder %v330, 2
  %v336 = vxor.u32 %v319, 2147483648
  %v337 = vsel %vm335, %v336, %v327
  %v338 = vsel %vm331, %v334, %v337
  %v339 = vsel %vm328, nan, %v338
  %vm340 = vcmask 64512
  %341 = vst.msk [vmem:[%s2] sm:$0xff] %vm340, %v184
  %342 = vst.msk [vmem:[%s2 + $0x8] sm:$0xff] %vm340, %v339
  %v343 = vand.u32 2147483647, %v28
  %vm344 = vcmp.le.f32.partialorder %v343, 0.7853982
  %vm345 = vcmp.lt.s32.totalorder %v28, 0
  %v346 = vand.u32 %v28, 2139095040
  %v347 = vshrl.u32 %v346, 23
  %v348 = vsub.s32 %v347, 127
  %v349 = vand.u32 2147483647, %v28
  %v350 = vand.u32 %v349, 8388607
  %v351 = vor.u32 %v350, 8388608
  %v352 = vsub.s32 0, %v351
  %v353 = vadd.s32 %v348, 1
  %vm354 = vcmp.gt.s32.totalorder %v353, 0
  %v355 = vsel %vm354, %v353, 0
  %v356 = vshrl.u32 %v355, 5
  %v357 = vand.u32 %v355, 31
  %v358 = vsub.s32 32, %v357
  %v359 = vshrl.u32 683565275, %v358
  %v360 = vshll.u32 683565275, %v357
  %v361 = vshrl.u32 2475754826, %v358
  %v362 = vor.u32 %v360, %v361
  %v363 = vshll.u32 2475754826, %v357
  %v364 = vshrl.u32 2131351028, %v358
  %v365 = vor.u32 %v363, %v364
  %v366 = vshll.u32 2131351028, %v357
  %v367 = vshrl.u32 2102212464, %v358
  %v368 = vor.u32 %v366, %v367
  %v369 = vshll.u32 2102212464, %v357
  %v370 = vshrl.u32 920167782, %v358
  %v371 = vor.u32 %v369, %v370
  %v372 = vshll.u32 920167782, %v357
  %v373 = vshrl.u32 1326507024, %v358
  %v374 = vor.u32 %v372, %v373
  %vm375 = vcmp.lt.s32.totalorder %v356, 1
  %vm376 = vcmp.lt.s32.totalorder %v356, 2
  %vm377 = vcmp.lt.s32.totalorder %v356, 3
  %vm378 = vcmp.lt.s32.totalorder %v356, 4
  %v379 = vsel %vm375, %v359, %v362
  %v380 = vsel %vm378, %v368, 2102212464
  %v381 = vsel %vm377, %v365, %v380
  %v382 = vsel %vm376, %v379, %v381
  %v383 = vsel %vm375, %v362, %v365
  %v384 = vsel %vm378, %v371, 920167782
  %v385 = vsel %vm377, %v368, %v384
  %v386 = vsel %vm376, %v383, %v385
  %v387 = vsel %vm375, %v365, %v368
  %v388 = vsel %vm378, %v374, 1326507024
  %v389 = vsel %vm377, %v371, %v388
  %v390 = vsel %vm376, %v387, %v389
  %v391 = vshll.u32 %v351, 8
  %v392 = vand.u32 %v391, 65535
  %v393 = vshrl.u32 %v391, 16
  %v394 = vand.u32 %v390, 65535
  %v395 = vshrl.u32 %v390, 16
  %v396 = vmul.u32 %v392, %v394
  %v397 = vmul.u32 %v392, %v395
  %v398 = vmul.u32 %v393, %v394
  %v399 = vmul.u32 %v393, %v395
  %v400 = vshll.u32 %v397, 16
  %v401 = vshrl.u32 %v397, 16
  %v402 = vshll.u32 %v398, 16
  %v403 = vshrl.u32 %v398, 16
  %vm404 = vc.u32 %v396, %v400
  %v405 = vsel %vm404, 1, 0
  %v406 = vadd.s32 %v396, %v400
  %v407 = vadd.s32 %v399, %v405
  %vm408 = vc.u32 %v406, %v402
  %v409 = vsel %vm408, 1, 0
  %v410 = vadd.s32 %v406, %v402
  %v411 = vadd.s32 %v407, %v409
  %v412 = vadd.s32 %v411, %v401
  %v413 = vadd.s32 %v412, %v403
  %v414 = vand.u32 %v391, 65535
  %v415 = vshrl.u32 %v391, 16
  %v416 = vand.u32 %v386, 65535
  %v417 = vshrl.u32 %v386, 16
  %v418 = vmul.u32 %v414, %v416
  %v419 = vmul.u32 %v414, %v417
  %v420 = vmul.u32 %v415, %v416
  %v421 = vmul.u32 %v415, %v417
  %v422 = vshll.u32 %v419, 16
  %v423 = vshrl.u32 %v419, 16
  %v424 = vshll.u32 %v420, 16
  %v425 = vshrl.u32 %v420, 16
  %vm426 = vc.u32 %v418, %v422
  %v427 = vsel %vm426, 1, 0
  %v428 = vadd.s32 %v418, %v422
  %v429 = vadd.s32 %v421, %v427
  %vm430 = vc.u32 %v428, %v424
  %v431 = vsel %vm430, 1, 0
  %v432 = vadd.s32 %v428, %v424
  %v433 = vadd.s32 %v429, %v431
  %v434 = vadd.s32 %v433, %v423
  %v435 = vadd.s32 %v434, %v425
  %v436 = vmul.u32 %v391, %v382
  %v437 = vadd.s32 %v413, %v432
  %vm438 = vc.u32 %v413, %v432
  %v439 = vadd.s32 %v435, 1
  %v440 = vsel %vm438, %v439, %v435
  %v441 = vadd.s32 %v436, %v440
  %v442 = vadd.s32 %v441, 536870912
  %v443 = vshrl.u32 %v442, 30
  %v444 = vshll.u32 %v443, 30
  %v445 = vsub.s32 %v441, %v444
  %vm446 = vcmp.lt.s32.totalorder %v445, 0
  %v447 = vsub.s32 0, %v445
  %v448 = vsel %vm446, %v447, %v445
  %v449 = vclz %v448
  %v450 = vsub.s32 %v449, 2
  %vm451 = vcmp.gt.s32.totalorder 0, %v450
  %v452 = vsel %vm451, 0, %v450
  %v453 = vsub.s32 32, %v452
  %v454 = vshll.u32 %v445, %v452
  %v455 = vshrl.u32 %v437, %v453
  %v456 = vor.u32 %v454, %v455
  %v457 = vsub.s32 4294967266, %v452
  %v458 = vadd.s32 %v457, 127
  %v459 = vshll.u32 %v458, 23
  %v460 = vor.u32 4788187, %v459
  %v461 = vand.u32 2147483647, %v460
  %v463 = vcvt.s32.f32 %v456
  %v464 = vmul.f32 %v463, %v461
  %v465 = vxor.u32 %v464, 2147483648
  %v466 = vsel %vm345, %v465, %v464
  %v467 = vsub.s32 4, %v443
  %v468 = vsel %vm345, %v467, %v443
  %v469 = vsel %vm344, %v28, %v466
  %v470 = vsel %vm344, 0, %v468
  %v471 = vmul.f32 %v469, %v469
  %v472 = vmul.f32 %v471, -0.001358992
  %v473 = vadd.f32 %v472, 0.041655596
  %v474 = vmul.f32 %v471, %v473
  %v475 = vadd.f32 %v474, -0.4999988
  %v476 = vmul.f32 %v471, %v475
  %v477 = vadd.f32 1.0, %v476
  %v478 = vmul.f32 %v469, %v469
  %v479 = vmul.f32 %v478, -0.00019511016
  %v480 = vadd.f32 %v479, 0.008332121
  %v481 = vmul.f32 %v478, %v480
  %v482 = vadd.f32 %v481, -0.16666654
  %v483 = vmul.f32 %v478, %v482
  %v484 = vadd.f32 %v483, 1.0
  %v485 = vmul.f32 %v484, %v469
  %vm486 = vweird.f32 %v28
  %v487 = vand.u32 %v470, 3
  %vm488 = vcmp.lt.s32.totalorder %v487, 2
  %vm489 = vcmp.eq.s32.totalorder %v487, 0
  %v490 = vxor.u32 %v485, 2147483648
  %v491 = vsel %vm489, %v477, %v490
  %vm492 = vcmp.eq.s32.totalorder %v487, 2
  %v493 = vxor.u32 %v477, 2147483648
  %v494 = vsel %vm492, %v493, %v485
  %v495 = vsel %vm488, %v491, %v494
  %v496 = vsel %vm486, nan, %v495
  %v497 = vand.u32 2147483647, %v29
  %vm498 = vcmp.le.f32.partialorder %v497, 0.7853982
  %vm499 = vcmp.lt.s32.totalorder %v29, 0
  %v500 = vand.u32 %v29, 2139095040
  %v501 = vshrl.u32 %v500, 23
  %v502 = vsub.s32 %v501, 127
  %v503 = vand.u32 2147483647, %v29
  %v504 = vand.u32 %v503, 8388607
  %v505 = vor.u32 %v504, 8388608
  %v506 = vsub.s32 0, %v505
  %v507 = vadd.s32 %v502, 1
  %vm508 = vcmp.gt.s32.totalorder %v507, 0
  %v509 = vsel %vm508, %v507, 0
  %v510 = vshrl.u32 %v509, 5
  %v511 = vand.u32 %v509, 31
  %v512 = vsub.s32 32, %v511
  %v513 = vshrl.u32 683565275, %v512
  %v514 = vshll.u32 683565275, %v511
  %v515 = vshrl.u32 2475754826, %v512
  %v516 = vor.u32 %v514, %v515
  %v517 = vshll.u32 2475754826, %v511
  %v518 = vshrl.u32 2131351028, %v512
  %v519 = vor.u32 %v517, %v518
  %v520 = vshll.u32 2131351028, %v511
  %v521 = vshrl.u32 2102212464, %v512
  %v522 = vor.u32 %v520, %v521
  %v523 = vshll.u32 2102212464, %v511
  %v524 = vshrl.u32 920167782, %v512
  %v525 = vor.u32 %v523, %v524
  %v526 = vshll.u32 920167782, %v511
  %v527 = vshrl.u32 1326507024, %v512
  %v528 = vor.u32 %v526, %v527
  %vm529 = vcmp.lt.s32.totalorder %v510, 1
  %vm530 = vcmp.lt.s32.totalorder %v510, 2
  %vm531 = vcmp.lt.s32.totalorder %v510, 3
  %vm532 = vcmp.lt.s32.totalorder %v510, 4
  %v533 = vsel %vm529, %v513, %v516
  %v534 = vsel %vm532, %v522, 2102212464
  %v535 = vsel %vm531, %v519, %v534
  %v536 = vsel %vm530, %v533, %v535
  %v537 = vsel %vm529, %v516, %v519
  %v538 = vsel %vm532, %v525, 920167782
  %v539 = vsel %vm531, %v522, %v538
  %v540 = vsel %vm530, %v537, %v539
  %v541 = vsel %vm529, %v519, %v522
  %v542 = vsel %vm532, %v528, 1326507024
  %v543 = vsel %vm531, %v525, %v542
  %v544 = vsel %vm530, %v541, %v543
  %v545 = vshll.u32 %v505, 8
  %v546 = vand.u32 %v545, 65535
  %v547 = vshrl.u32 %v545, 16
  %v548 = vand.u32 %v544, 65535
  %v549 = vshrl.u32 %v544, 16
  %v550 = vmul.u32 %v546, %v548
  %v551 = vmul.u32 %v546, %v549
  %v552 = vmul.u32 %v547, %v548
  %v553 = vmul.u32 %v547, %v549
  %v554 = vshll.u32 %v551, 16
  %v555 = vshrl.u32 %v551, 16
  %v556 = vshll.u32 %v552, 16
  %v557 = vshrl.u32 %v552, 16
  %vm558 = vc.u32 %v550, %v554
  %v559 = vsel %vm558, 1, 0
  %v560 = vadd.s32 %v550, %v554
  %v561 = vadd.s32 %v553, %v559
  %vm562 = vc.u32 %v560, %v556
  %v563 = vsel %vm562, 1, 0
  %v564 = vadd.s32 %v560, %v556
  %v565 = vadd.s32 %v561, %v563
  %v566 = vadd.s32 %v565, %v555
  %v567 = vadd.s32 %v566, %v557
  %v568 = vand.u32 %v545, 65535
  %v569 = vshrl.u32 %v545, 16
  %v570 = vand.u32 %v540, 65535
  %v571 = vshrl.u32 %v540, 16
  %v572 = vmul.u32 %v568, %v570
  %v573 = vmul.u32 %v568, %v571
  %v574 = vmul.u32 %v569, %v570
  %v575 = vmul.u32 %v569, %v571
  %v576 = vshll.u32 %v573, 16
  %v577 = vshrl.u32 %v573, 16
  %v578 = vshll.u32 %v574, 16
  %v579 = vshrl.u32 %v574, 16
  %vm580 = vc.u32 %v572, %v576
  %v581 = vsel %vm580, 1, 0
  %v582 = vadd.s32 %v572, %v576
  %v583 = vadd.s32 %v575, %v581
  %vm584 = vc.u32 %v582, %v578
  %v585 = vsel %vm584, 1, 0
  %v586 = vadd.s32 %v582, %v578
  %v587 = vadd.s32 %v583, %v585
  %v588 = vadd.s32 %v587, %v577
  %v589 = vadd.s32 %v588, %v579
  %v590 = vmul.u32 %v545, %v536
  %v591 = vadd.s32 %v567, %v586
  %vm592 = vc.u32 %v567, %v586
  %v593 = vadd.s32 %v589, 1
  %v594 = vsel %vm592, %v593, %v589
  %v595 = vadd.s32 %v590, %v594
  %v596 = vadd.s32 %v595, 536870912
  %v597 = vshrl.u32 %v596, 30
  %v598 = vshll.u32 %v597, 30
  %v599 = vsub.s32 %v595, %v598
  %vm600 = vcmp.lt.s32.totalorder %v599, 0
  %v601 = vsub.s32 0, %v599
  %v602 = vsel %vm600, %v601, %v599
  %v603 = vclz %v602
  %v604 = vsub.s32 %v603, 2
  %vm605 = vcmp.gt.s32.totalorder 0, %v604
  %v606 = vsel %vm605, 0, %v604
  %v607 = vsub.s32 32, %v606
  %v608 = vshll.u32 %v599, %v606
  %v609 = vshrl.u32 %v591, %v607
  %v610 = vor.u32 %v608, %v609
  %v611 = vsub.s32 4294967266, %v606
  %v612 = vadd.s32 %v611, 127
  %v613 = vshll.u32 %v612, 23
  %v614 = vor.u32 4788187, %v613
  %v615 = vand.u32 2147483647, %v614
  %v617 = vcvt.s32.f32 %v610
  %v618 = vmul.f32 %v617, %v615
  %v619 = vxor.u32 %v618, 2147483648
  %v620 = vsel %vm499, %v619, %v618
  %v621 = vsub.s32 4, %v597
  %v622 = vsel %vm499, %v621, %v597
  %v623 = vsel %vm498, %v29, %v620
  %v624 = vsel %vm498, 0, %v622
  %v625 = vmul.f32 %v623, %v623
  %v626 = vmul.f32 %v625, -0.001358992
  %v627 = vadd.f32 %v626, 0.041655596
  %v628 = vmul.f32 %v625, %v627
  %v629 = vadd.f32 %v628, -0.4999988
  %v630 = vmul.f32 %v625, %v629
  %v631 = vadd.f32 1.0, %v630
  %v632 = vmul.f32 %v623, %v623
  %v633 = vmul.f32 %v632, -0.00019511016
  %v634 = vadd.f32 %v633, 0.008332121
  %v635 = vmul.f32 %v632, %v634
  %v636 = vadd.f32 %v635, -0.16666654
  %v637 = vmul.f32 %v632, %v636
  %v638 = vadd.f32 %v637, 1.0
  %v639 = vmul.f32 %v638, %v623
  %vm640 = vweird.f32 %v29
  %v641 = vand.u32 %v624, 3
  %vm642 = vcmp.lt.s32.totalorder %v641, 2
  %vm643 = vcmp.eq.s32.totalorder %v641, 0
  %v644 = vxor.u32 %v639, 2147483648
  %v645 = vsel %vm643, %v631, %v644
  %vm646 = vcmp.eq.s32.totalorder %v641, 2
  %v647 = vxor.u32 %v631, 2147483648
  %v648 = vsel %vm646, %v647, %v639
  %v649 = vsel %vm642, %v645, %v648
  %v650 = vsel %vm640, nan, %v649
  %651 = vst.msk [vmem:[%s2 + $0x10] sm:$0xff] %vm340, %v496
  %652 = vst.msk [vmem:[%s2 + $0x18] sm:$0xff] %vm340, %v650
  // Predicated region
  $region10: #{tpu_custom_call.1} parent=0 // pred_check
    _
  $region11: #{tpu_custom_call.1} parent=0 // pred_check_branch
    %654 = sbr.rel (0) target = $region13
  $region12: #{tpu_custom_call.1} parent=0 // pred_region
    _
  $region13: #{tpu_custom_call.1} parent=0 // pred_fallthru
    _
  // Predicated region
  $region14: #{tpu_custom_call.1} parent=0 // pred_check
    _
  $region15: #{tpu_custom_call.1} parent=0 // pred_check_branch
    %656 = sbr.rel (0) target = $region17
  $region16: #{tpu_custom_call.1} parent=0 // pred_region
    _
  $region17: #{tpu_custom_call.1} parent=0 // pred_fallthru
    _

</llo_original>
